<compile_context>
chip_gen: v6e
topology: v6e:2x2x1
jax: 0.10.0
libtpu: 0.0.40
codegen_flags: <defaults>
</compile_context>

<pallas_src>
import functools

import jax
import jax.numpy as jnp
from jax.experimental import pallas as pl
from jax.experimental.pallas import tpu as pltpu


def _mlp_kernel(xf_ref, cr_ref, prev_ref, w1_ref, b1_ref, w2_ref, b2_ref,
                out_ref, xin_scratch, *, d_xf, ch):
    # In-kernel feature concat: write both input slabs into one VMEM scratch so
    # layer 1 is a single MXU pass over the full W1 (no second K=8 matmul).
    xin_scratch[:, :d_xf] = xf_ref[...]
    xin_scratch[:, d_xf:] = cr_ref[...]

    # layer 1: (tb, d_in) @ (d_in, d_hid) + b1, ReLU
    h = jnp.dot(xin_scratch[...], w1_ref[...], preferred_element_type=jnp.float32)
    h = jnp.maximum(h + b1_ref[...], 0.0)

    # layer 2: (tb, d_hid) @ (d_hid, ch) + b2
    o = jnp.dot(h, w2_ref[...], preferred_element_type=jnp.float32) + b2_ref[...]

    # Fused output concat [mlp_out, prev_feature]: two lane-partial stores into
    # the same output tile -> one HBM writeback, no XLA concat afterwards.
    out_ref[:, :ch] = o.astype(out_ref.dtype)
    out_ref[:, ch:] = prev_ref[...].astype(out_ref.dtype)


def phase2_user_init_forward(x, prev_feature, channel_relay_user, params, *,
                             ch, tile_b=2048, min_pallas_batch=16):
    """params = (w1, b1, w2, b2) with w* stored as (in_features, out_features).

    Biases may be 1-D (like torch.nn.Linear) or (1, d); both are accepted.
    """
    B = x.shape[0]
    xf = x.reshape(B, -1)                      # (B, 2*L*N)
    cr = channel_relay_user.reshape(B, -1)     # (B, 2*L)
    prev = prev_feature.reshape(B, -1)         # (B, P)
    d_xf, d_cr, P = xf.shape[1], cr.shape[1], prev.shape[1]
    d_in = d_xf + d_cr

    w1, b1, w2, b2 = params
    w1 = w1.reshape(d_in, -1)
    d_hid = w1.shape[1]
    b1 = b1.reshape(1, d_hid)
    w2 = w2.reshape(d_hid, ch)
    b2 = b2.reshape(1, ch)

    # Tiny batches: launch + single-step pipeline overhead > compute; let XLA
    # fuse the plain expression (it also avoids a degenerate 1-step grid).
    if B < min_pallas_batch:
        out = jnp.maximum(jnp.concatenate([xf, cr], axis=1) @ w1 + b1, 0.0) @ w2 + b2
        return jnp.concatenate([out, prev], axis=1)

    # Batch tile: as big as comfortable, but always >= 2 grid steps so the
    # "parallel" batch axis can shard across both TensorCores on v7x.
    tb = min(tile_b, B)
    tb = min(tb, -(-B // 2))            # ceil(B/2) -> at least 2 grid steps
    tb = max(8, ((tb + 7) // 8) * 8)    # sublane-align
    grid = (pl.cdiv(B, tb),)

    out_w = ch + P

    # VMEM budget (f32 bytes): double-buffered activation tiles (in + out),
    # VMEM-resident params (x2 buffers), in-kernel intermediates, + headroom.
    act_in = 2 * tb * (d_xf + d_cr + P) * 4
    act_out = 2 * tb * out_w * 4
    interm = tb * (d_in + d_hid + ch) * 4
    param_bytes = 2 * (w1.size + b1.size + w2.size + b2.size) * 4
    needed = int(1.5 * (act_in + act_out + interm + param_bytes))
    try:
        vmem_cap = int(pltpu.get_tpu_info().vmem_capacity_bytes)
    except Exception:
        vmem_cap = 64 * 1024 * 1024     # conservative fallback: v7x physical VMEM
    vmem_limit = int(min(max(needed, 16 * 1024 * 1024), (3 * vmem_cap) // 4))

    return pl.pallas_call(
        functools.partial(_mlp_kernel, d_xf=d_xf, ch=ch),
        out_shape=jax.ShapeDtypeStruct((B, out_w), jnp.float32),
        grid=grid,
        in_specs=[
            pl.BlockSpec((tb, d_xf), lambda i: (i, 0)),      # xf    (batch-tiled)
            pl.BlockSpec((tb, d_cr), lambda i: (i, 0)),      # cr    (batch-tiled)
            pl.BlockSpec((tb, P), lambda i: (i, 0)),         # prev  (batch-tiled)
            pl.BlockSpec((d_in, d_hid), lambda i: (0, 0)),   # W1    (VMEM-resident)
            pl.BlockSpec((1, d_hid), lambda i: (0, 0)),      # b1    (VMEM-resident)
            pl.BlockSpec((d_hid, ch), lambda i: (0, 0)),     # W2    (VMEM-resident)
            pl.BlockSpec((1, ch), lambda i: (0, 0)),         # b2    (VMEM-resident)
        ],
        out_specs=pl.BlockSpec((tb, out_w), lambda i: (i, 0)),
        scratch_shapes=[pltpu.VMEM((tb, d_in), jnp.float32)],
        compiler_params=pltpu.CompilerParams(
            dimension_semantics=("parallel",),
            vmem_limit_bytes=vmem_limit,
        ),
    )(xf, cr, prev, w1, b1, w2, b2)


def init_params(key, L, N, ch):
    """Deterministic synthetic init matching the nn.Linear shapes of self.C."""
    d_in = 2 * L * N + 2 * L
    d_hid = 2 * ch
    k1, k2, k3, k4 = jax.random.split(key, 4)
    # weights stored transposed: (in_features, out_features); biases 1-D like torch
    w1 = jax.random.normal(k1, (d_in, d_hid), jnp.float32) * 0.1
    b1 = jax.random.normal(k2, (d_hid,), jnp.float32) * 0.1
    w2 = jax.random.normal(k3, (d_hid, ch), jnp.float32) * 0.1
    b2 = jax.random.normal(k4, (ch,), jnp.float32) * 0.1
    return w1, b1, w2, b2


def _reference(x, prev_feature, channel_relay_user, params):
    B = x.shape[0]
    xin = jnp.concatenate(
        [x.reshape(B, -1), channel_relay_user.reshape(B, -1)], axis=1)
    w1, b1, w2, b2 = params
    out = jnp.maximum(xin @ w1 + b1.reshape(1, -1), 0.0) @ w2 + b2.reshape(1, -1)
    return jnp.concatenate([out, prev_feature], axis=1)


if __name__ == "__main__":
    # module hyperparameters (in_dim and M only affect the unused L_layer)
    in_dim, M, N, L, ch = 16, 2, 8, 4, 32

    key = jax.random.PRNGKey(0)
    kx, kp, kc, kw = jax.random.split(key, 4)
    params = init_params(kw, L, N, ch)

    # shapes chosen so the flattened dims match the Linear input: 2*L*N + 2*L
    B = 128
    x = jax.random.normal(kx, (B, 2 * L, N), jnp.float32)               # -> (B, 2*L*N)
    channel_relay_user = jax.random.normal(kc, (B, 2, L), jnp.float32)  # -> (B, 2*L)
    prev_feature = jax.random.normal(kp, (B, in_dim), jnp.float32)

    ref = _reference(x, prev_feature, channel_relay_user, params)

    # 1) Pallas path: B=128 -> tb=64, grid=(2,) "parallel" (both TCs on v7x).
    out = phase2_user_init_forward(x, prev_feature, channel_relay_user, params, ch=ch)
    out = jax.block_until_ready(out)
    assert out.shape == (B, ch + in_dim)
    assert jnp.allclose(out, ref, atol=1e-5, rtol=1e-5)

    # 2) Pallas path with a ragged final block: B=100 -> tb=56, grid=(2,).
    out_edge = phase2_user_init_forward(
        x[:100], prev_feature[:100], channel_relay_user[:100], params, ch=ch)
    out_edge = jax.block_until_ready(out_edge)
    assert jnp.allclose(out_edge, ref[:100], atol=1e-5, rtol=1e-5)

    # 3) Small-batch short circuit (B=2): plain fused XLA expression.
    out_small = phase2_user_init_forward(
        x[:2], prev_feature[:2], channel_relay_user[:2], params, ch=ch)
    out_small = jax.block_until_ready(out_small)
    assert jnp.allclose(out_small, ref[:2], atol=1e-5, rtol=1e-5)

    print("KERNEL_OK")
</pallas_src>

<mosaic_0001>
module attributes {stable_mosaic.version = 11 : i64} {
  func.func @_mlp_kernel(%arg0: i32, %arg1: memref<64x64xf32, #tpu.memory_space<vmem>>, %arg2: memref<64x8xf32, #tpu.memory_space<vmem>>, %arg3: memref<64x16xf32, #tpu.memory_space<vmem>>, %arg4: memref<72x64xf32, #tpu.memory_space<vmem>>, %arg5: memref<1x64xf32, #tpu.memory_space<vmem>>, %arg6: memref<64x32xf32, #tpu.memory_space<vmem>>, %arg7: memref<1x32xf32, #tpu.memory_space<vmem>>, %arg8: memref<64x48xf32, #tpu.memory_space<vmem>>, %arg9: memref<64x72xf32, #tpu.memory_space<vmem>>) attributes {dimension_semantics = [#tpu.dimension_semantics<parallel>], iteration_bounds = array<i64: 2>, scalar_prefetch = 0 : i64, scratch_operands = 1 : i64, tpu.core_type = #tpu.core_type<tc>, window_params = [{transform_indices = @transform_0, window_bounds = array<i64: 64, 64>}, {transform_indices = @transform_1, window_bounds = array<i64: 64, 8>}, {transform_indices = @transform_2, window_bounds = array<i64: 64, 16>}, {pipeline_mode = #tpu.pipeline_mode<synchronous>, transform_indices = @transform_3, window_bounds = array<i64: 72, 64>}, {pipeline_mode = #tpu.pipeline_mode<synchronous>, transform_indices = @transform_4, window_bounds = array<i64: 1, 64>}, {pipeline_mode = #tpu.pipeline_mode<synchronous>, transform_indices = @transform_5, window_bounds = array<i64: 64, 32>}, {pipeline_mode = #tpu.pipeline_mode<synchronous>, transform_indices = @transform_6, window_bounds = array<i64: 1, 32>}, {transform_indices = @transform_7, window_bounds = array<i64: 64, 48>}]} {
    %c0 = arith.constant 0 : index
    %c0_0 = arith.constant 0 : index
    %0 = vector.load %arg1[%c0, %c0_0] : memref<64x64xf32, #tpu.memory_space<vmem>>, vector<64x64xf32>
    %c0_1 = arith.constant 0 : index
    %c0_2 = arith.constant 0 : index
    %1 = vector.load %arg9[%c0_1, %c0_2] : memref<64x72xf32, #tpu.memory_space<vmem>>, vector<64x64xf32>
    tpu.vector_store %arg9[%c0_1, %c0_2], %0 {strides = array<i32>} : memref<64x72xf32, #tpu.memory_space<vmem>>, vector<64x64xf32>,
    %c0_3 = arith.constant 0 : index
    %c0_4 = arith.constant 0 : index
    %2 = vector.load %arg2[%c0_3, %c0_4] : memref<64x8xf32, #tpu.memory_space<vmem>>, vector<64x8xf32>
    %c0_5 = arith.constant 0 : index
    %c64 = arith.constant 64 : index
    %3 = vector.load %arg9[%c0_5, %c64] : memref<64x72xf32, #tpu.memory_space<vmem>>, vector<64x8xf32>
    tpu.vector_store %arg9[%c0_5, %c64], %2 {strides = array<i32>} : memref<64x72xf32, #tpu.memory_space<vmem>>, vector<64x8xf32>,
    %c0_6 = arith.constant 0 : index
    %c0_7 = arith.constant 0 : index
    %4 = vector.load %arg9[%c0_6, %c0_7] : memref<64x72xf32, #tpu.memory_space<vmem>>, vector<64x72xf32>
    %c0_8 = arith.constant 0 : index
    %c0_9 = arith.constant 0 : index
    %5 = vector.load %arg4[%c0_8, %c0_9] : memref<72x64xf32, #tpu.memory_space<vmem>>, vector<72x64xf32>
    %cst = arith.constant dense<0.000000e+00> : vector<64x64xf32>
    %6 = tpu.matmul %4, %5, %cst {dimension_numbers = #tpu.dot_dimension_numbers<[1], [0], [0], [1], [0, 0, 1, 1], [], []>} : vector<64x72xf32>, vector<72x64xf32>, vector<64x64xf32> -> vector<64x64xf32>
    %c0_10 = arith.constant 0 : index
    %c0_11 = arith.constant 0 : index
    %7 = vector.load %arg5[%c0_10, %c0_11] : memref<1x64xf32, #tpu.memory_space<vmem>>, vector<1x64xf32>
    %8 = vector.broadcast %7 : vector<1x64xf32> to vector<64x64xf32>
    %9 = arith.addf %6, %8 : vector<64x64xf32>
    %cst_12 = arith.constant 0.000000e+00 : f32
    %10 = vector.broadcast %cst_12 : f32 to vector<64x64xf32>
    %11 = arith.maximumf %9, %10 : vector<64x64xf32>
    %c0_13 = arith.constant 0 : index
    %c0_14 = arith.constant 0 : index
    %12 = vector.load %arg6[%c0_13, %c0_14] : memref<64x32xf32, #tpu.memory_space<vmem>>, vector<64x32xf32>
    %cst_15 = arith.constant dense<0.000000e+00> : vector<64x32xf32>
    %13 = tpu.matmul %11, %12, %cst_15 {dimension_numbers = #tpu.dot_dimension_numbers<[1], [0], [0], [1], [0, 0, 1, 1], [], []>} : vector<64x64xf32>, vector<64x32xf32>, vector<64x32xf32> -> vector<64x32xf32>
    %c0_16 = arith.constant 0 : index
    %c0_17 = arith.constant 0 : index
    %14 = vector.load %arg7[%c0_16, %c0_17] : memref<1x32xf32, #tpu.memory_space<vmem>>, vector<1x32xf32>
    %15 = vector.broadcast %14 : vector<1x32xf32> to vector<64x32xf32>
    %16 = arith.addf %13, %15 : vector<64x32xf32>
    %c0_18 = arith.constant 0 : index
    %c0_19 = arith.constant 0 : index
    %17 = vector.load %arg8[%c0_18, %c0_19] : memref<64x48xf32, #tpu.memory_space<vmem>>, vector<64x32xf32>
    tpu.vector_store %arg8[%c0_18, %c0_19], %16 {strides = array<i32>} : memref<64x48xf32, #tpu.memory_space<vmem>>, vector<64x32xf32>,
    %c0_20 = arith.constant 0 : index
    %c0_21 = arith.constant 0 : index
    %18 = vector.load %arg3[%c0_20, %c0_21] : memref<64x16xf32, #tpu.memory_space<vmem>>, vector<64x16xf32>
    %c0_22 = arith.constant 0 : index
    %c32 = arith.constant 32 : index
    %19 = vector.load %arg8[%c0_22, %c32] : memref<64x48xf32, #tpu.memory_space<vmem>>, vector<64x16xf32>
    tpu.vector_store %arg8[%c0_22, %c32], %18 {strides = array<i32>} : memref<64x48xf32, #tpu.memory_space<vmem>>, vector<64x16xf32>,
    return
  }
  func.func @transform_0(%arg0: i32) -> (i32, i32) {
    %c0_i32 = arith.constant 0 : i32
    %c0_i32_0 = arith.constant 0 : i32
    return %arg0, %c0_i32 : i32, i32
  }
  func.func @transform_1(%arg0: i32) -> (i32, i32) {
    %c0_i32 = arith.constant 0 : i32
    %c0_i32_0 = arith.constant 0 : i32
    return %arg0, %c0_i32 : i32, i32
  }
  func.func @transform_2(%arg0: i32) -> (i32, i32) {
    %c0_i32 = arith.constant 0 : i32
    %c0_i32_0 = arith.constant 0 : i32
    return %arg0, %c0_i32 : i32, i32
  }
  func.func @transform_3(%arg0: i32) -> (i32, i32) {
    %c0_i32 = arith.constant 0 : i32
    %c0_i32_0 = arith.constant 0 : i32
    %c0_i32_1 = arith.constant 0 : i32
    return %c0_i32, %c0_i32_0 : i32, i32
  }
  func.func @transform_4(%arg0: i32) -> (i32, i32) {
    %c0_i32 = arith.constant 0 : i32
    %c0_i32_0 = arith.constant 0 : i32
    %c0_i32_1 = arith.constant 0 : i32
    return %c0_i32, %c0_i32_0 : i32, i32
  }
  func.func @transform_5(%arg0: i32) -> (i32, i32) {
    %c0_i32 = arith.constant 0 : i32
    %c0_i32_0 = arith.constant 0 : i32
    %c0_i32_1 = arith.constant 0 : i32
    return %c0_i32, %c0_i32_0 : i32, i32
  }
  func.func @transform_6(%arg0: i32) -> (i32, i32) {
    %c0_i32 = arith.constant 0 : i32
    %c0_i32_0 = arith.constant 0 : i32
    %c0_i32_1 = arith.constant 0 : i32
    return %c0_i32, %c0_i32_0 : i32, i32
  }
  func.func @transform_7(%arg0: i32) -> (i32, i32) {
    %c0_i32 = arith.constant 0 : i32
    %c0_i32_0 = arith.constant 0 : i32
    return %arg0, %c0_i32 : i32, i32
  }
}

</mosaic_0001>

<llo_original>
// kernel: tpu_custom_call.1
$region0: #{tpu_custom_call.1}
  #allocation0 [shape = 'u32[]', space=smem, size = 0x4, offset = 0x4, fixed_abs, tag = 'smem constant byte address 0x4 - core index']
  #allocation1 [shape = 'u32[144,128]{1,0:T(1,128)}', space=vmem, size = 0x12000, scoped, tag = 'internal scratch']
  #allocation2 [shape = 'f32[64,72]{1,0:T(8,128)}', space=vmem, size = 0x8000, scoped, tag = 'scratch operand']
  %s0 = inlined_call_operand.vmem [shape: f32[128,64], index: 0, kind: input, shape index: {}]
  %s1 = inlined_call_operand.vmem [shape: f32[128,8], index: 1, kind: input, shape index: {}]
  %s2 = inlined_call_operand.vmem [shape: f32[128,16], index: 2, kind: input, shape index: {}]
  %s3 = inlined_call_operand.vmem [shape: f32[72,64], index: 3, kind: input, shape index: {}]
  %s4 = inlined_call_operand.vmem [shape: f32[1,64], index: 4, kind: input, shape index: {}]
  %s5 = inlined_call_operand.vmem [shape: f32[64,32], index: 5, kind: input, shape index: {}]
  %s6 = inlined_call_operand.vmem [shape: f32[1,32], index: 6, kind: input, shape index: {}]
  %s7 = inlined_call_operand.vmem [shape: f32[128,48], index: 7, kind: output, shape index: {}]
  %s8 = sld [smem:[#allocation0]]
  $region61: #{tpu_custom_call.1} parent=0
    _
  %s10 = ssub.s32 1, %s8
  %s11 = scalar_select 0, %s10, %s8
  loop: start=0, step=1, limit=4
  $region2: #{tpu_custom_call.1} parent=0 // loop_pre_header
    _
  $region3: #{tpu_custom_call.1} parent=0 // loop_header
    %s13 = sphi 0, %s17
    %p14 = scmp.ge.s32.totalorder %s13, 4
    %s23 = sphi 0, %s25
    %s26 = sphi 0, %s23
    %s27 = sphi 0, %s26
    %s43 = sphi 0, %s27
    %s49 = sphi 0, %s51
    %s52 = sphi 0, %s49
    %s53 = sphi 0, %s52
    %s69 = sphi 0, %s53
    %s75 = sphi 0, %s77
    %s78 = sphi 0, %s75
    %s79 = sphi 0, %s78
    %s95 = sphi 0, %s79
    %s99 = sphi 0, %s99
    %s101 = sphi 0, %s99
    %s102 = sphi 0, %s101
    %s116 = sphi 0, %s102
    %s120 = sphi 0, %s120
    %s122 = sphi 0, %s120
    %s123 = sphi 0, %s122
    %s137 = sphi 0, %s123
    %s141 = sphi 0, %s141
    %s143 = sphi 0, %s141
    %s144 = sphi 0, %s143
    %s158 = sphi 0, %s144
    %s162 = sphi 0, %s162
    %s164 = sphi 0, %s162
    %s165 = sphi 0, %s164
    %s179 = sphi 0, %s165
    %s185 = sphi 0, %s187
    %s188 = sphi 0, %s185
    %s189 = sphi 0, %s188
    %s205 = sphi 0, %s189
  $region4: #{tpu_custom_call.1} parent=0 // loop_header_branch
    %16 = sbr.rel (%p14) target = $region8
  $region5: #{tpu_custom_call.1} parent=0 // loop_body
    %s18 = ssub.s32 %s13, 1
    %s19 = ssub.s32 %s13, 2
    %s20 = sadd.s32 %s13, 1
    %s21 = ssub.s32 %s13, %s20
    %p22 = scmp.eq.s32.totalorder %s21, 0
    %s24 = sadd.s32 %s23, 1
    %s25 = scalar_select %p22, %s23, %s24
    %p28 = pneg %p22
    %p29 = scmp.eq.s32.totalorder %s13, 1
    %p30 = por %p28, %p29
    %p31 = scmp.ne.s32.totalorder %s23, %s26
    %p32 = scmp.eq.s32.totalorder %s13, 0
    %p33 = por %p31, %p32
    %p34 = scmp.ne.s32.totalorder %s23, %s26
    %p35 = scmp.eq.s32.totalorder %s18, 1
    %p36 = por %p34, %p35
    %p37 = scmp.ne.s32.totalorder %s26, %s27
    %p38 = scmp.eq.s32.totalorder %s18, 0
    %p39 = por %p37, %p38
    %p40 = scmp.ne.s32.totalorder %s26, %s27
    %p41 = scmp.eq.s32.totalorder %s19, 1
    %p42 = por %p40, %p41
    %p44 = scmp.ne.s32.totalorder %s27, %s43
    %p45 = scmp.eq.s32.totalorder %s19, 0
    %p46 = por %p44, %p45
    %s47 = ssub.s32 %s13, %s20
    %p48 = scmp.eq.s32.totalorder %s47, 0
    %s50 = sadd.s32 %s49, 1
    %s51 = scalar_select %p48, %s49, %s50
    %p54 = pneg %p48
    %p55 = scmp.eq.s32.totalorder %s13, 1
    %p56 = por %p54, %p55
    %p57 = scmp.ne.s32.totalorder %s49, %s52
    %p58 = scmp.eq.s32.totalorder %s13, 0
    %p59 = por %p57, %p58
    %p60 = scmp.ne.s32.totalorder %s49, %s52
    %p61 = scmp.eq.s32.totalorder %s18, 1
    %p62 = por %p60, %p61
    %p63 = scmp.ne.s32.totalorder %s52, %s53
    %p64 = scmp.eq.s32.totalorder %s18, 0
    %p65 = por %p63, %p64
    %p66 = scmp.ne.s32.totalorder %s52, %s53
    %p67 = scmp.eq.s32.totalorder %s19, 1
    %p68 = por %p66, %p67
    %p70 = scmp.ne.s32.totalorder %s53, %s69
    %p71 = scmp.eq.s32.totalorder %s19, 0
    %p72 = por %p70, %p71
    %s73 = ssub.s32 %s13, %s20
    %p74 = scmp.eq.s32.totalorder %s73, 0
    %s76 = sadd.s32 %s75, 1
    %s77 = scalar_select %p74, %s75, %s76
    %p80 = pneg %p74
    %p81 = scmp.eq.s32.totalorder %s13, 1
    %p82 = por %p80, %p81
    %p83 = scmp.ne.s32.totalorder %s75, %s78
    %p84 = scmp.eq.s32.totalorder %s13, 0
    %p85 = por %p83, %p84
    %p86 = scmp.ne.s32.totalorder %s75, %s78
    %p87 = scmp.eq.s32.totalorder %s18, 1
    %p88 = por %p86, %p87
    %p89 = scmp.ne.s32.totalorder %s78, %s79
    %p90 = scmp.eq.s32.totalorder %s18, 0
    %p91 = por %p89, %p90
    %p92 = scmp.ne.s32.totalorder %s78, %s79
    %p93 = scmp.eq.s32.totalorder %s19, 1
    %p94 = por %p92, %p93
    %p96 = scmp.ne.s32.totalorder %s79, %s95
    %p97 = scmp.eq.s32.totalorder %s19, 0
    %p98 = por %p96, %p97
    %s100 = sadd.s32 %s99, 1
    %p103 = scmp.eq.s32.totalorder %s13, 1
    %p104 = scmp.ne.s32.totalorder %s99, %s101
    %p105 = scmp.eq.s32.totalorder %s13, 0
    %p106 = por %p104, %p105
    %p107 = scmp.ne.s32.totalorder %s99, %s101
    %p108 = scmp.eq.s32.totalorder %s18, 1
    %p109 = por %p107, %p108
    %p110 = scmp.ne.s32.totalorder %s101, %s102
    %p111 = scmp.eq.s32.totalorder %s18, 0
    %p112 = por %p110, %p111
    %p113 = scmp.ne.s32.totalorder %s101, %s102
    %p114 = scmp.eq.s32.totalorder %s19, 1
    %p115 = por %p113, %p114
    %p117 = scmp.ne.s32.totalorder %s102, %s116
    %p118 = scmp.eq.s32.totalorder %s19, 0
    %p119 = por %p117, %p118
    %s121 = sadd.s32 %s120, 1
    %p124 = scmp.eq.s32.totalorder %s13, 1
    %p125 = scmp.ne.s32.totalorder %s120, %s122
    %p126 = scmp.eq.s32.totalorder %s13, 0
    %p127 = por %p125, %p126
    %p128 = scmp.ne.s32.totalorder %s120, %s122
    %p129 = scmp.eq.s32.totalorder %s18, 1
    %p130 = por %p128, %p129
    %p131 = scmp.ne.s32.totalorder %s122, %s123
    %p132 = scmp.eq.s32.totalorder %s18, 0
    %p133 = por %p131, %p132
    %p134 = scmp.ne.s32.totalorder %s122, %s123
    %p135 = scmp.eq.s32.totalorder %s19, 1
    %p136 = por %p134, %p135
    %p138 = scmp.ne.s32.totalorder %s123, %s137
    %p139 = scmp.eq.s32.totalorder %s19, 0
    %p140 = por %p138, %p139
    %s142 = sadd.s32 %s141, 1
    %p145 = scmp.eq.s32.totalorder %s13, 1
    %p146 = scmp.ne.s32.totalorder %s141, %s143
    %p147 = scmp.eq.s32.totalorder %s13, 0
    %p148 = por %p146, %p147
    %p149 = scmp.ne.s32.totalorder %s141, %s143
    %p150 = scmp.eq.s32.totalorder %s18, 1
    %p151 = por %p149, %p150
    %p152 = scmp.ne.s32.totalorder %s143, %s144
    %p153 = scmp.eq.s32.totalorder %s18, 0
    %p154 = por %p152, %p153
    %p155 = scmp.ne.s32.totalorder %s143, %s144
    %p156 = scmp.eq.s32.totalorder %s19, 1
    %p157 = por %p155, %p156
    %p159 = scmp.ne.s32.totalorder %s144, %s158
    %p160 = scmp.eq.s32.totalorder %s19, 0
    %p161 = por %p159, %p160
    %s163 = sadd.s32 %s162, 1
    %p166 = scmp.eq.s32.totalorder %s13, 1
    %p167 = scmp.ne.s32.totalorder %s162, %s164
    %p168 = scmp.eq.s32.totalorder %s13, 0
    %p169 = por %p167, %p168
    %p170 = scmp.ne.s32.totalorder %s162, %s164
    %p171 = scmp.eq.s32.totalorder %s18, 1
    %p172 = por %p170, %p171
    %p173 = scmp.ne.s32.totalorder %s164, %s165
    %p174 = scmp.eq.s32.totalorder %s18, 0
    %p175 = por %p173, %p174
    %p176 = scmp.ne.s32.totalorder %s164, %s165
    %p177 = scmp.eq.s32.totalorder %s19, 1
    %p178 = por %p176, %p177
    %p180 = scmp.ne.s32.totalorder %s165, %s179
    %p181 = scmp.eq.s32.totalorder %s19, 0
    %p182 = por %p180, %p181
    %s183 = ssub.s32 %s13, %s20
    %p184 = scmp.eq.s32.totalorder %s183, 0
    %s186 = sadd.s32 %s185, 1
    %s187 = scalar_select %p184, %s185, %s186
    %p190 = pneg %p184
    %p191 = scmp.eq.s32.totalorder %s13, 1
    %p192 = por %p190, %p191
    %p193 = scmp.ne.s32.totalorder %s185, %s188
    %p194 = scmp.eq.s32.totalorder %s13, 0
    %p195 = por %p193, %p194
    %p196 = scmp.ne.s32.totalorder %s185, %s188
    %p197 = scmp.eq.s32.totalorder %s18, 1
    %p198 = por %p196, %p197
    %p199 = scmp.ne.s32.totalorder %s188, %s189
    %p200 = scmp.eq.s32.totalorder %s18, 0
    %p201 = por %p199, %p200
    %p202 = scmp.ne.s32.totalorder %s188, %s189
    %p203 = scmp.eq.s32.totalorder %s19, 1
    %p204 = por %p202, %p203
    %p206 = scmp.ne.s32.totalorder %s189, %s205
    %p207 = scmp.eq.s32.totalorder %s19, 0
    %p208 = por %p206, %p207
    %p209 = scmp.le.s32.totalorder 1, %s13
    %p210 = scmp.lt.s32.totalorder %s13, 3
    %p211 = pnand %p209, %p210
    %p212 = pneg %p211
    // Predicated region
    $region9: #{tpu_custom_call.1} parent=5 // pred_check
      _
    $region10: #{tpu_custom_call.1} parent=5 // pred_check_branch
      %214 = sbr.rel (%p211) target = $region12
    $region11: #{tpu_custom_call.1} parent=5 // pred_region
      %s215 = ssub.s32 %s13, 1
      // Predicated region
      $region13: #{tpu_custom_call.1} parent=11 // pred_check
        %p216 = pneg %p112
      $region14: #{tpu_custom_call.1} parent=11 // pred_check_branch
        %218 = sbr.rel (%p216) target = $region16
      $region15: #{tpu_custom_call.1} parent=11 // pred_region
        _
      $region16: #{tpu_custom_call.1} parent=11 // pred_fallthru
        _
      // Predicated region
      $region17: #{tpu_custom_call.1} parent=11 // pred_check
        %p219 = pneg %p133
      $region18: #{tpu_custom_call.1} parent=11 // pred_check_branch
        %221 = sbr.rel (%p219) target = $region20
      $region19: #{tpu_custom_call.1} parent=11 // pred_region
        _
      $region20: #{tpu_custom_call.1} parent=11 // pred_fallthru
        _
      // Predicated region
      $region21: #{tpu_custom_call.1} parent=11 // pred_check
        %p222 = pneg %p154
      $region22: #{tpu_custom_call.1} parent=11 // pred_check_branch
        %224 = sbr.rel (%p222) target = $region24
      $region23: #{tpu_custom_call.1} parent=11 // pred_region
        _
      $region24: #{tpu_custom_call.1} parent=11 // pred_fallthru
        _
      // Predicated region
      $region25: #{tpu_custom_call.1} parent=11 // pred_check
        %p225 = pneg %p175
      $region26: #{tpu_custom_call.1} parent=11 // pred_check_branch
        %227 = sbr.rel (%p225) target = $region28
      $region27: #{tpu_custom_call.1} parent=11 // pred_region
        _
      $region28: #{tpu_custom_call.1} parent=11 // pred_fallthru
        _
    $region12: #{tpu_custom_call.1} parent=5 // pred_fallthru
      _
    %p228 = scmp.lt.s32.totalorder %s13, 2
    // Predicated region
    $region29: #{tpu_custom_call.1} parent=5 // pred_check
      %p229 = pneg %p228
    $region30: #{tpu_custom_call.1} parent=5 // pred_check_branch
      %231 = sbr.rel (%p229) target = $region32
    $region31: #{tpu_custom_call.1} parent=5 // pred_region
      // Predicated region
      $region33: #{tpu_custom_call.1} parent=31 // pred_check
        %p232 = pneg %p33
      $region34: #{tpu_custom_call.1} parent=31 // pred_check_branch
        %234 = sbr.rel (%p232) target = $region36
      $region35: #{tpu_custom_call.1} parent=31 // pred_region
        %s235 = smul.u32 8, %s13
        %p236 = scmp.lt.s32.totalorder %s235, 15
        %s237 = scalar_select %p236, %s235, 15
        %s238 = smul.addr %s237, 8
        %s239 = scalar_lea.vmem %s0, %s238
        %s240 = smul.u32 8, %s13
      $region36: #{tpu_custom_call.1} parent=31 // pred_fallthru
        _
      // Predicated region
      $region37: #{tpu_custom_call.1} parent=31 // pred_check
        %p241 = pneg %p59
      $region38: #{tpu_custom_call.1} parent=31 // pred_check_branch
        %243 = sbr.rel (%p241) target = $region40
      $region39: #{tpu_custom_call.1} parent=31 // pred_region
        %s244 = smul.u32 8, %s13
        %p245 = scmp.lt.s32.totalorder %s244, 15
        %s246 = scalar_select %p245, %s244, 15
        %s247 = smul.addr %s246, 8
        %s248 = scalar_lea.vmem %s1, %s247
        %s249 = smul.u32 8, %s13
      $region40: #{tpu_custom_call.1} parent=31 // pred_fallthru
        _
      // Predicated region
      $region41: #{tpu_custom_call.1} parent=31 // pred_check
        %p250 = pneg %p85
      $region42: #{tpu_custom_call.1} parent=31 // pred_check_branch
        %252 = sbr.rel (%p250) target = $region44
      $region43: #{tpu_custom_call.1} parent=31 // pred_region
        %s253 = smul.u32 8, %s13
        %p254 = scmp.lt.s32.totalorder %s253, 15
        %s255 = scalar_select %p254, %s253, 15
        %s256 = smul.addr %s255, 8
        %s257 = scalar_lea.vmem %s2, %s256
        %s258 = smul.u32 8, %s13
      $region44: #{tpu_custom_call.1} parent=31 // pred_fallthru
        _
    $region32: #{tpu_custom_call.1} parent=5 // pred_fallthru
      _
    %p259 = scmp.le.s32.totalorder 1, %s13
    %p260 = scmp.lt.s32.totalorder %s13, 3
    %p261 = pnand %p259, %p260
    %p262 = pneg %p261
    // Predicated region
    $region45: #{tpu_custom_call.1} parent=5 // pred_check
      _
    $region46: #{tpu_custom_call.1} parent=5 // pred_check_branch
      %264 = sbr.rel (%p261) target = $region48
    $region47: #{tpu_custom_call.1} parent=5 // pred_region
      %s265 = ssub.s32 %s13, 1
      %s266 = smul.u32 8, %s18
      %p267 = scmp.lt.s32.totalorder %s266, 15
      %s268 = scalar_select %p267, %s266, 15
      %s269 = smul.addr %s268, 8
      %s270 = scalar_lea.vmem %s0, %s269
      %p271 = pneg %p39
      %p272 = pneg %p36
      %s273 = smul.u32 8, %s18
      %p274 = scmp.lt.s32.totalorder %s273, 15
      %s275 = scalar_select %p274, %s273, 15
      %s276 = smul.addr %s275, 8
      %s277 = scalar_lea.vmem %s1, %s276
      %p278 = pneg %p65
      %p279 = pneg %p62
      %s280 = smul.u32 8, %s18
      %p281 = scmp.lt.s32.totalorder %s280, 15
      %s282 = scalar_select %p281, %s280, 15
      %s283 = smul.addr %s282, 8
      %s284 = scalar_lea.vmem %s2, %s283
      %p285 = pneg %p91
      %p286 = pneg %p88
      %p287 = pneg %p112
      %p288 = pneg %p109
      %p289 = pneg %p133
      %p290 = pneg %p130
      %p291 = pneg %p154
      %p292 = pneg %p151
      %p293 = pneg %p175
      %p294 = pneg %p172
      %p295 = pneg %p201
      %p296 = pneg %p198
      %s297 = smul.u32 8, %s18
      %p298 = scmp.lt.s32.totalorder %s297, 15
      %s299 = scalar_select %p298, %s297, 15
      %s300 = smul.addr %s299, 8
      %s301 = scalar_lea.vmem %s7, %s300
      %s302 = smul.u32 8, %s18
      %p303 = scmp.lt.s32.totalorder %s302, 15
      %s304 = scalar_select %p303, %s302, 15
      %s305 = smul.addr %s304, 8
      %s306 = scalar_lea.vmem %s0, %s305
      %s307 = smul.u32 8, %s18
      %s308 = smul.u32 8, %s18
      %p309 = scmp.lt.s32.totalorder %s308, 15
      %s310 = scalar_select %p309, %s308, 15
      %s311 = smul.addr %s310, 8
      %s312 = scalar_lea.vmem %s1, %s311
      %s313 = smul.u32 8, %s18
      %s314 = smul.u32 8, %s18
      %p315 = scmp.lt.s32.totalorder %s314, 15
      %s316 = scalar_select %p315, %s314, 15
      %s317 = smul.addr %s316, 8
      %s318 = scalar_lea.vmem %s2, %s317
      %s319 = smul.u32 8, %s18
      %s320 = smul.u32 8, %s18
      %p321 = scmp.lt.s32.totalorder %s320, 15
      %s322 = scalar_select %p321, %s320, 15
      %s323 = smul.addr %s322, 8
      %s324 = scalar_lea.vmem %s7, %s323
      %s325 = smul.u32 8, %s18
      %v326 = vld [vmem:[%s306] sm:$0xff]
      %v327 = vld [vmem:[%s306 + $0x8] sm:$0xff]
      %v328 = vld [vmem:[%s306 + $0x10] sm:$0xff]
      %v329 = vld [vmem:[%s306 + $0x18] sm:$0xff]
      %v330 = vld [vmem:[%s306 + $0x20] sm:$0xff]
      %v331 = vld [vmem:[%s306 + $0x28] sm:$0xff]
      %v332 = vld [vmem:[%s306 + $0x30] sm:$0xff]
      %v333 = vld [vmem:[%s306 + $0x38] sm:$0xff]
      %vm334 = vcmask 523264
      %335 = vst.msk [vmem:[#allocation2] sm:$0xff] %vm334, %v326
      %336 = vst.msk [vmem:[#allocation2 + $0x8] sm:$0xff] %vm334, %v327
      %337 = vst.msk [vmem:[#allocation2 + $0x10] sm:$0xff] %vm334, %v328
      %338 = vst.msk [vmem:[#allocation2 + $0x18] sm:$0xff] %vm334, %v329
      %339 = vst.msk [vmem:[#allocation2 + $0x20] sm:$0xff] %vm334, %v330
      %340 = vst.msk [vmem:[#allocation2 + $0x28] sm:$0xff] %vm334, %v331
      %341 = vst.msk [vmem:[#allocation2 + $0x30] sm:$0xff] %vm334, %v332
      %342 = vst.msk [vmem:[#allocation2 + $0x38] sm:$0xff] %vm334, %v333
      %v343 = vld [vmem:[%s312] sm:$0xff]
      %v344 = vld [vmem:[%s312 + $0x8] sm:$0xff]
      %v345 = vld [vmem:[%s312 + $0x10] sm:$0xff]
      %v346 = vld [vmem:[%s312 + $0x18] sm:$0xff]
      %v347 = vld [vmem:[%s312 + $0x20] sm:$0xff]
      %v348 = vld [vmem:[%s312 + $0x28] sm:$0xff]
      %v349 = vld [vmem:[%s312 + $0x30] sm:$0xff]
      %v350 = vld [vmem:[%s312 + $0x38] sm:$0xff]
      %359 = vrot.lane.b32.xlu0 %v343, 64
      %v360 = vpop.permute.xlu0 %359
      %361 = vrot.lane.b32.xlu0 %v344, 64
      %v362 = vpop.permute.xlu0 %361
      %363 = vrot.lane.b32.xlu0 %v345, 64
      %v364 = vpop.permute.xlu0 %363
      %365 = vrot.lane.b32.xlu0 %v346, 64
      %v366 = vpop.permute.xlu0 %365
      %367 = vrot.lane.b32.xlu0 %v347, 64
      %v368 = vpop.permute.xlu0 %367
      %369 = vrot.lane.b32.xlu0 %v348, 64
      %v370 = vpop.permute.xlu0 %369
      %371 = vrot.lane.b32.xlu0 %v349, 64
      %v372 = vpop.permute.xlu0 %371
      %373 = vrot.lane.b32.xlu0 %v350, 64
      %v374 = vpop.permute.xlu0 %373
      %vm383 = vcmask 589312
      %384 = vst.msk [vmem:[#allocation2] sm:$0xff] %vm383, %v360
      %385 = vst.msk [vmem:[#allocation2 + $0x8] sm:$0xff] %vm383, %v362
      %386 = vst.msk [vmem:[#allocation2 + $0x10] sm:$0xff] %vm383, %v364
      %387 = vst.msk [vmem:[#allocation2 + $0x18] sm:$0xff] %vm383, %v366
      %388 = vst.msk [vmem:[#allocation2 + $0x20] sm:$0xff] %vm383, %v368
      %389 = vst.msk [vmem:[#allocation2 + $0x28] sm:$0xff] %vm383, %v370
      %390 = vst.msk [vmem:[#allocation2 + $0x30] sm:$0xff] %vm383, %v372
      %391 = vst.msk [vmem:[#allocation2 + $0x38] sm:$0xff] %vm383, %v374
      %v392 = vld [vmem:[#allocation2] sm:$0xff]
      %v393 = vld [vmem:[#allocation2 + $0x8] sm:$0xff]
      %v394 = vld [vmem:[#allocation2 + $0x10] sm:$0xff]
      %v395 = vld [vmem:[#allocation2 + $0x18] sm:$0xff]
      %v396 = vld [vmem:[#allocation2 + $0x20] sm:$0xff]
      %v397 = vld [vmem:[#allocation2 + $0x28] sm:$0xff]
      %v398 = vld [vmem:[#allocation2 + $0x30] sm:$0xff]
      %v399 = vld [vmem:[#allocation2 + $0x38] sm:$0xff]
      %v400 = vld [vmem:[%s3] sm:$0xff]
      %v401 = vld [vmem:[%s3 + $0x8] sm:$0xff]
      %v402 = vld [vmem:[%s3 + $0x10] sm:$0xff]
      %v403 = vld [vmem:[%s3 + $0x18] sm:$0xff]
      %v404 = vld [vmem:[%s3 + $0x20] sm:$0xff]
      %v405 = vld [vmem:[%s3 + $0x28] sm:$0xff]
      %v406 = vld [vmem:[%s3 + $0x30] sm:$0xff]
      %v407 = vld [vmem:[%s3 + $0x38] sm:$0xff]
      %v408 = vld [vmem:[%s3 + $0x40] sm:$0xff]
      %v409 = vld [vmem:[%s4] sm:$0x1]
      %v411 = vlaneseq
      %v412 = vshrl.u32 %v411, 7
      %v413 = vsub.s32 0, %v412
      %v414 = vrot.slane %v409, %v413
      %vm416 = vcmask 588800
      %v418 = vsel %vm416, %v392, 0
      %v421 = vsel %vm416, %v393, 0
      %v424 = vsel %vm416, %v394, 0
      %v427 = vsel %vm416, %v395, 0
      %v430 = vsel %vm416, %v396, 0
      %v433 = vsel %vm416, %v397, 0
      %v436 = vsel %vm416, %v398, 0
      %v439 = vsel %vm416, %v399, 0
      %441 = vmatprep.subr.mxu0 0.0
      %442 = vmatpush1.msra.mxu0 0.0
      %443 = vmatprep.subr.mxu0 0.0
      %444 = vmatpush1.msra.mxu0 0.0
      %445 = vmatprep.subr.mxu0 0.0
      %446 = vmatpush1.msra.mxu0 0.0
      %447 = vmatprep.subr.mxu0 0.0
      %448 = vmatpush1.msra.mxu0 0.0
      %449 = vmatprep.subr.mxu0 0.0
      %450 = vmatpush1.msra.mxu0 0.0
      %451 = vmatprep.subr.mxu0 0.0
      %452 = vmatpush1.msra.mxu0 0.0
      %453 = vmatprep.subr.mxu0 0.0
      %454 = vmatpush1.msra.mxu0 0.0
      %455 = vmatprep.subr.mxu0 0.0
      %456 = vmatpush1.msra.mxu0 %v408
      %457 = vmatprep.subr.mxu0 0.0
      %458 = vmatpush1.msra.mxu0 %v407
      %459 = vmatprep.subr.mxu0 0.0
      %460 = vmatpush1.msra.mxu0 %v406
      %461 = vmatprep.subr.mxu0 0.0
      %462 = vmatpush1.msra.mxu0 %v405
      %463 = vmatprep.subr.mxu0 0.0
      %464 = vmatpush1.msra.mxu0 %v404
      %465 = vmatprep.subr.mxu0 0.0
      %466 = vmatpush1.msra.mxu0 %v403
      %467 = vmatprep.subr.mxu0 0.0
      %468 = vmatpush1.msra.mxu0 %v402
      %469 = vmatprep.subr.mxu0 0.0
      %470 = vmatpush1.msra.mxu0 %v401
      %471 = vmatprep.subr.mxu0 0.0
      %472 = vmatpush1.msra.mxu0 %v400
      %473 = vmatprep.subr.mxu0 0.0
      %474 = vmatpush2.msra.mxu0 0.0
      %475 = vmatprep.subr.mxu0 0.0
      %476 = vmatpush2.msra.mxu0 0.0
      %477 = vmatprep.subr.mxu0 0.0
      %478 = vmatpush2.msra.mxu0 0.0
      %479 = vmatprep.subr.mxu0 0.0
      %480 = vmatpush2.msra.mxu0 0.0
      %481 = vmatprep.subr.mxu0 0.0
      %482 = vmatpush2.msra.mxu0 0.0
      %483 = vmatprep.subr.mxu0 0.0
      %484 = vmatpush2.msra.mxu0 0.0
      %485 = vmatprep.subr.mxu0 0.0
      %486 = vmatpush2.msra.mxu0 0.0
      %487 = vmatprep.subr.mxu0 0.0
      %488 = vmatpush2.msra.mxu0 0.0
      %489 = vmatprep.subr.mxu0 0.0
      %490 = vmatpush2.msra.mxu0 0.0
      %491 = vmatprep.subr.mxu0 0.0
      %492 = vmatpush2.msra.mxu0 0.0
      %493 = vmatprep.subr.mxu0 0.0
      %494 = vmatpush2.msra.mxu0 0.0
      %495 = vmatprep.subr.mxu0 0.0
      %496 = vmatpush2.msra.mxu0 0.0
      %497 = vmatprep.subr.mxu0 0.0
      %498 = vmatpush2.msra.mxu0 0.0
      %499 = vmatprep.subr.mxu0 0.0
      %500 = vmatpush2.msra.mxu0 0.0
      %501 = vmatprep.subr.mxu0 0.0
      %502 = vmatpush2.msra.mxu0 0.0
      %503 = vmatprep.subr.mxu0 0.0
      %504 = vmatpush2.msra.mxu0 0.0
      %505 = vmatprep.mubr.f32.mxu0 0.0
      %506 = vmatmul.mubr.f32.gmra.mxu0 %v418
      %v507 = vpop.f32.mrf.mxu0
      %v508 = vadd.f32 %v414, %v507
      %v509 = vpop.f32.mrf.mxu0
      %510 = vmatprep.mubr.f32.mxu0 0.0
      %511 = vmatmul.mubr.f32.gmra.mxu0 %v421
      %v512 = vpop.f32.mrf.mxu0
      %v513 = vadd.f32 %v414, %v512
      %v514 = vpop.f32.mrf.mxu0
      %515 = vmatprep.mubr.f32.mxu0 0.0
      %516 = vmatmul.mubr.f32.gmra.mxu0 %v424
      %v517 = vpop.f32.mrf.mxu0
      %v518 = vadd.f32 %v414, %v517
      %v519 = vpop.f32.mrf.mxu0
      %520 = vmatprep.mubr.f32.mxu0 0.0
      %521 = vmatmul.mubr.f32.gmra.mxu0 %v427
      %v522 = vpop.f32.mrf.mxu0
      %v523 = vadd.f32 %v414, %v522
      %v524 = vpop.f32.mrf.mxu0
      %525 = vmatprep.mubr.f32.mxu0 0.0
      %526 = vmatmul.mubr.f32.gmra.mxu0 %v430
      %v527 = vpop.f32.mrf.mxu0
      %v528 = vadd.f32 %v414, %v527
      %v529 = vpop.f32.mrf.mxu0
      %530 = vmatprep.mubr.f32.mxu0 0.0
      %531 = vmatmul.mubr.f32.gmra.mxu0 %v433
      %v532 = vpop.f32.mrf.mxu0
      %v533 = vadd.f32 %v414, %v532
      %v534 = vpop.f32.mrf.mxu0
      %535 = vmatprep.mubr.f32.mxu0 0.0
      %536 = vmatmul.mubr.f32.gmra.mxu0 %v436
      %v537 = vpop.f32.mrf.mxu0
      %v538 = vadd.f32 %v414, %v537
      %v539 = vpop.f32.mrf.mxu0
      %540 = vmatprep.mubr.f32.mxu0 0.0
      %541 = vmatmul.mubr.f32.gmra.mxu0 %v439
      %v542 = vpop.f32.mrf.mxu0
      %v543 = vadd.f32 %v414, %v542
      %v544 = vpop.f32.mrf.mxu0
      %545 = vdwg.mxu0
      %v546 = vmax.f32 %v508, 0.0
      %v547 = vmax.f32 %v513, 0.0
      %v548 = vmax.f32 %v518, 0.0
      %v549 = vmax.f32 %v523, 0.0
      %v550 = vmax.f32 %v528, 0.0
      %v551 = vmax.f32 %v533, 0.0
      %v552 = vmax.f32 %v538, 0.0
      %v553 = vmax.f32 %v543, 0.0
      %v554 = vld [vmem:[%s5] sm:$0xff]
      %v555 = vld [vmem:[%s5 + $0x8] sm:$0xff]
      %v556 = vld [vmem:[%s5 + $0x10] sm:$0xff]
      %v557 = vld [vmem:[%s5 + $0x18] sm:$0xff]
      %v558 = vld [vmem:[%s5 + $0x20] sm:$0xff]
      %v559 = vld [vmem:[%s5 + $0x28] sm:$0xff]
      %v560 = vld [vmem:[%s5 + $0x30] sm:$0xff]
      %v561 = vld [vmem:[%s5 + $0x38] sm:$0xff]
      %v562 = vld [vmem:[%s6] sm:$0x1]
      %v564 = vlaneseq
      %v565 = vshrl.u32 %v564, 7
      %v566 = vsub.s32 0, %v565
      %v567 = vrot.slane %v562, %v566
      %v570 = vsel %vm334, %v546, 0
      %v573 = vsel %vm334, %v547, 0
      %v576 = vsel %vm334, %v548, 0
      %v579 = vsel %vm334, %v549, 0
      %v582 = vsel %vm334, %v550, 0
      %v585 = vsel %vm334, %v551, 0
      %v588 = vsel %vm334, %v552, 0
      %v591 = vsel %vm334, %v553, 0
      %593 = vmatprep.subr.mxu0 0.0
      %594 = vmatpush1.msra.mxu0 0.0
      %595 = vmatprep.subr.mxu0 0.0
      %596 = vmatpush1.msra.mxu0 0.0
      %597 = vmatprep.subr.mxu0 0.0
      %598 = vmatpush1.msra.mxu0 0.0
      %599 = vmatprep.subr.mxu0 0.0
      %600 = vmatpush1.msra.mxu0 0.0
      %601 = vmatprep.subr.mxu0 0.0
      %602 = vmatpush1.msra.mxu0 0.0
      %603 = vmatprep.subr.mxu0 0.0
      %604 = vmatpush1.msra.mxu0 0.0
      %605 = vmatprep.subr.mxu0 0.0
      %606 = vmatpush1.msra.mxu0 0.0
      %607 = vmatprep.subr.mxu0 0.0
      %608 = vmatpush1.msra.mxu0 0.0
      %609 = vmatprep.subr.mxu0 0.0
      %610 = vmatpush1.msra.mxu0 %v561
      %611 = vmatprep.subr.mxu0 0.0
      %612 = vmatpush1.msra.mxu0 %v560
      %613 = vmatprep.subr.mxu0 0.0
      %614 = vmatpush1.msra.mxu0 %v559
      %615 = vmatprep.subr.mxu0 0.0
      %616 = vmatpush1.msra.mxu0 %v558
      %617 = vmatprep.subr.mxu0 0.0
      %618 = vmatpush1.msra.mxu0 %v557
      %619 = vmatprep.subr.mxu0 0.0
      %620 = vmatpush1.msra.mxu0 %v556
      %621 = vmatprep.subr.mxu0 0.0
      %622 = vmatpush1.msra.mxu0 %v555
      %623 = vmatprep.subr.mxu0 0.0
      %624 = vmatpush1.msra.mxu0 %v554
      %625 = vmatprep.subr.mxu0 0.0
      %626 = vmatpush2.msra.mxu0 0.0
      %627 = vmatprep.subr.mxu0 0.0
      %628 = vmatpush2.msra.mxu0 0.0
      %629 = vmatprep.subr.mxu0 0.0
      %630 = vmatpush2.msra.mxu0 0.0
      %631 = vmatprep.subr.mxu0 0.0
      %632 = vmatpush2.msra.mxu0 0.0
      %633 = vmatprep.subr.mxu0 0.0
      %634 = vmatpush2.msra.mxu0 0.0
      %635 = vmatprep.subr.mxu0 0.0
      %636 = vmatpush2.msra.mxu0 0.0
      %637 = vmatprep.subr.mxu0 0.0
      %638 = vmatpush2.msra.mxu0 0.0
      %639 = vmatprep.subr.mxu0 0.0
      %640 = vmatpush2.msra.mxu0 0.0
      %641 = vmatprep.subr.mxu0 0.0
      %642 = vmatpush2.msra.mxu0 0.0
      %643 = vmatprep.subr.mxu0 0.0
      %644 = vmatpush2.msra.mxu0 0.0
      %645 = vmatprep.subr.mxu0 0.0
      %646 = vmatpush2.msra.mxu0 0.0
      %647 = vmatprep.subr.mxu0 0.0
      %648 = vmatpush2.msra.mxu0 0.0
      %649 = vmatprep.subr.mxu0 0.0
      %650 = vmatpush2.msra.mxu0 0.0
      %651 = vmatprep.subr.mxu0 0.0
      %652 = vmatpush2.msra.mxu0 0.0
      %653 = vmatprep.subr.mxu0 0.0
      %654 = vmatpush2.msra.mxu0 0.0
      %655 = vmatprep.subr.mxu0 0.0
      %656 = vmatpush2.msra.mxu0 0.0
      %657 = vmatprep.mubr.f32.mxu0 0.0
      %658 = vmatmul.mubr.f32.gmra.mxu0 %v570
      %v659 = vpop.f32.mrf.mxu0
      %v660 = vadd.f32 %v567, %v659
      %v661 = vpop.f32.mrf.mxu0
      %662 = vmatprep.mubr.f32.mxu0 0.0
      %663 = vmatmul.mubr.f32.gmra.mxu0 %v573
      %v664 = vpop.f32.mrf.mxu0
      %v665 = vadd.f32 %v567, %v664
      %v666 = vpop.f32.mrf.mxu0
      %667 = vmatprep.mubr.f32.mxu0 0.0
      %668 = vmatmul.mubr.f32.gmra.mxu0 %v576
      %v669 = vpop.f32.mrf.mxu0
      %v670 = vadd.f32 %v567, %v669
      %v671 = vpop.f32.mrf.mxu0
      %672 = vmatprep.mubr.f32.mxu0 0.0
      %673 = vmatmul.mubr.f32.gmra.mxu0 %v579
      %v674 = vpop.f32.mrf.mxu0
      %v675 = vadd.f32 %v567, %v674
      %v676 = vpop.f32.mrf.mxu0
      %677 = vmatprep.mubr.f32.mxu0 0.0
      %678 = vmatmul.mubr.f32.gmra.mxu0 %v582
      %v679 = vpop.f32.mrf.mxu0
      %v680 = vadd.f32 %v567, %v679
      %v681 = vpop.f32.mrf.mxu0
      %682 = vmatprep.mubr.f32.mxu0 0.0
      %683 = vmatmul.mubr.f32.gmra.mxu0 %v585
      %v684 = vpop.f32.mrf.mxu0
      %v685 = vadd.f32 %v567, %v684
      %v686 = vpop.f32.mrf.mxu0
      %687 = vmatprep.mubr.f32.mxu0 0.0
      %688 = vmatmul.mubr.f32.gmra.mxu0 %v588
      %v689 = vpop.f32.mrf.mxu0
      %v690 = vadd.f32 %v567, %v689
      %v691 = vpop.f32.mrf.mxu0
      %692 = vmatprep.mubr.f32.mxu0 0.0
      %693 = vmatmul.mubr.f32.gmra.mxu0 %v591
      %v694 = vpop.f32.mrf.mxu0
      %v695 = vadd.f32 %v567, %v694
      %v696 = vpop.f32.mrf.mxu0
      %697 = vdwg.mxu0
      %vm698 = vcmask 261120
      %699 = vst.msk [vmem:[%s324] sm:$0xff] %vm698, %v660
      %700 = vst.msk [vmem:[%s324 + $0x8] sm:$0xff] %vm698, %v665
      %701 = vst.msk [vmem:[%s324 + $0x10] sm:$0xff] %vm698, %v670
      %702 = vst.msk [vmem:[%s324 + $0x18] sm:$0xff] %vm698, %v675
      %703 = vst.msk [vmem:[%s324 + $0x20] sm:$0xff] %vm698, %v680
      %704 = vst.msk [vmem:[%s324 + $0x28] sm:$0xff] %vm698, %v685
      %705 = vst.msk [vmem:[%s324 + $0x30] sm:$0xff] %vm698, %v690
      %706 = vst.msk [vmem:[%s324 + $0x38] sm:$0xff] %vm698, %v695
      %v707 = vld [vmem:[%s318] sm:$0xff]
      %v708 = vld [vmem:[%s318 + $0x8] sm:$0xff]
      %v709 = vld [vmem:[%s318 + $0x10] sm:$0xff]
      %v710 = vld [vmem:[%s318 + $0x18] sm:$0xff]
      %v711 = vld [vmem:[%s318 + $0x20] sm:$0xff]
      %v712 = vld [vmem:[%s318 + $0x28] sm:$0xff]
      %v713 = vld [vmem:[%s318 + $0x30] sm:$0xff]
      %v714 = vld [vmem:[%s318 + $0x38] sm:$0xff]
      %723 = vrot.lane.b32.xlu0 %v707, 32
      %v724 = vpop.permute.xlu0 %723
      %725 = vrot.lane.b32.xlu0 %v708, 32
      %v726 = vpop.permute.xlu0 %725
      %727 = vrot.lane.b32.xlu0 %v709, 32
      %v728 = vpop.permute.xlu0 %727
      %729 = vrot.lane.b32.xlu0 %v710, 32
      %v730 = vpop.permute.xlu0 %729
      %731 = vrot.lane.b32.xlu0 %v711, 32
      %v732 = vpop.permute.xlu0 %731
      %733 = vrot.lane.b32.xlu0 %v712, 32
      %v734 = vpop.permute.xlu0 %733
      %735 = vrot.lane.b32.xlu0 %v713, 32
      %v736 = vpop.permute.xlu0 %735
      %737 = vrot.lane.b32.xlu0 %v714, 32
      %v738 = vpop.permute.xlu0 %737
      %vm747 = vcmask 392448
      %748 = vst.msk [vmem:[%s324] sm:$0xff] %vm747, %v724
      %749 = vst.msk [vmem:[%s324 + $0x8] sm:$0xff] %vm747, %v726
      %750 = vst.msk [vmem:[%s324 + $0x10] sm:$0xff] %vm747, %v728
      %751 = vst.msk [vmem:[%s324 + $0x18] sm:$0xff] %vm747, %v730
      %752 = vst.msk [vmem:[%s324 + $0x20] sm:$0xff] %vm747, %v732
      %753 = vst.msk [vmem:[%s324 + $0x28] sm:$0xff] %vm747, %v734
      %754 = vst.msk [vmem:[%s324 + $0x30] sm:$0xff] %vm747, %v736
      %755 = vst.msk [vmem:[%s324 + $0x38] sm:$0xff] %vm747, %v738
      %s756 = smul.u32 8, %s18
      %p757 = scmp.lt.s32.totalorder %s756, 15
      %s758 = scalar_select %p757, %s756, 15
      %s759 = smul.addr %s758, 8
      %s760 = scalar_lea.vmem %s7, %s759
      // Predicated region
      $region49: #{tpu_custom_call.1} parent=47 // pred_check
        %p761 = pneg %p198
      $region50: #{tpu_custom_call.1} parent=47 // pred_check_branch
        %763 = sbr.rel (%p761) target = $region52
      $region51: #{tpu_custom_call.1} parent=47 // pred_region
        %s764 = smul.u32 8, %s18
      $region52: #{tpu_custom_call.1} parent=47 // pred_fallthru
        _
    $region48: #{tpu_custom_call.1} parent=5 // pred_fallthru
      _
    %p765 = scmp.le.s32.totalorder 2, %s13
    // Predicated region
    $region53: #{tpu_custom_call.1} parent=5 // pred_check
      %p766 = pneg %p765
    $region54: #{tpu_custom_call.1} parent=5 // pred_check_branch
      %768 = sbr.rel (%p766) target = $region56
    $region55: #{tpu_custom_call.1} parent=5 // pred_region
      %s769 = ssub.s32 %s13, 2
      // Predicated region
      $region57: #{tpu_custom_call.1} parent=55 // pred_check
        %p770 = pneg %p204
      $region58: #{tpu_custom_call.1} parent=55 // pred_check_branch
        %772 = sbr.rel (%p770) target = $region60
      $region59: #{tpu_custom_call.1} parent=55 // pred_region
        %s773 = smul.u32 8, %s19
        %p774 = scmp.lt.s32.totalorder %s773, 15
        %s775 = scalar_select %p774, %s773, 15
        %s776 = smul.addr %s775, 8
        %s777 = scalar_lea.vmem %s7, %s776
      $region60: #{tpu_custom_call.1} parent=55 // pred_fallthru
        _
    $region56: #{tpu_custom_call.1} parent=5 // pred_fallthru
      _
  $region6: #{tpu_custom_call.1} parent=0 // loop_footer
    %s17 = sadd.s32 1, %s13
  $region7: #{tpu_custom_call.1} parent=0 // loop_footer_branch
    %12 = sbr.rel target = $region3
  $region8: #{tpu_custom_call.1} parent=0 // loop_exit
    _

</llo_original>
